<compile_context>
chip_gen: v6e
topology: v6e:2x2x1
jax: 0.10.0
libtpu: 0.0.40
codegen_flags: <defaults>
</compile_context>

<pallas_src>
import functools

import jax
import jax.numpy as jnp
from jax import lax
from jax.experimental import pallas as pl
from jax.experimental.pallas import tpu as pltpu


_VMEM_TILE_BUDGET = 32 * 1024 * 1024   # target for tiles + resident weights
_VMEM_LIMIT_BYTES = 48 * 1024 * 1024   # explicit scoped-VMEM limit (< v7x 64 MiB)
_WEIGHT_VMEM_CAP = 24 * 1024 * 1024    # max VMEM we allow the resident weights
_MIN_PALLAS_ELEMS = 1 << 16            # below this, pallas launch is pure overhead


def _round_up(x, m):
    return (x + m - 1) // m * m


def _reference(x, w1, w2):
    return jnp.tanh(x @ w1) @ w2


def _mlp_kernel(x_ref, w1_ref, w2_ref, o_ref, *, hid_chunk, n_chunks):
    """out = tanh(x @ W1) @ W2, chunked over the hidden dim, f32 accumulate."""
    x = x_ref[...]
    if n_chunks == 1:
        h = jnp.tanh(jnp.dot(x, w1_ref[...], preferred_element_type=jnp.float32))
        out = jnp.dot(h, w2_ref[...], preferred_element_type=jnp.float32)
    else:
        def body(c, acc):
            start = pl.multiple_of(c * hid_chunk, hid_chunk)
            h = jnp.tanh(jnp.dot(x, w1_ref[:, pl.ds(start, hid_chunk)],
                                 preferred_element_type=jnp.float32))
            return acc + jnp.dot(h, w2_ref[pl.ds(start, hid_chunk), :],
                                 preferred_element_type=jnp.float32)

        out = lax.fori_loop(0, n_chunks, body,
                            jnp.zeros(o_ref.shape, jnp.float32),
                            unroll=(n_chunks <= 4))
    o_ref[...] = out.astype(o_ref.dtype)


def _choose_tile_b(B, tile_b):
    """Pick a batch tile: prefer >= 2 grid steps (feeds both v7x TCs)."""
    if B >= 16:
        two_way = _round_up(pl.cdiv(B, 2), 8)
        tb = min(tile_b, two_way)
    else:
        tb = min(tile_b, B)
    if tb < B:
        tb = max(8, (tb // 8) * 8)   # sub-full tiles must be sublane aligned
    return min(tb, B)


def _vmem_bytes(tile_b, in_sz, hid_pad, out_pad, hid_chunk):
    f32 = 4
    x_buf = 2 * tile_b * in_sz * f32                           # double-buffered input
    o_buf = 2 * tile_b * out_pad * f32                         # double-buffered output
    w_buf = 2 * (in_sz * hid_pad + hid_pad * out_pad) * f32    # weights (conservative 2x)
    tmp = tile_b * (hid_chunk + out_pad) * f32                 # tanh chunk + accumulator
    return x_buf + o_buf + w_buf + tmp


def net_forward_pallas(x, w1, w2, *, tile_b=1024, hid_chunk=512):
    """Pallas implementation of Net.forward: tanh(x @ w1) @ w2."""
    B, in_sz = x.shape
    in_w, hid = w1.shape
    hid_w, out_sz = w2.shape
    assert in_sz == in_w and hid == hid_w

    # Lane-dense output + 128-aligned hidden chunks.
    out_pad = _round_up(out_sz, 128)
    hid_chunk = max(128, _round_up(min(hid_chunk, hid), 128))
    hid_pad = _round_up(hid, hid_chunk)
    n_chunks = hid_pad // hid_chunk

    # Weights stay fully VMEM-resident in this kernel; bail out if they cannot.
    weight_bytes = 2 * (in_sz * hid_pad + hid_pad * out_pad) * 4
    if weight_bytes > _WEIGHT_VMEM_CAP:
        # TODO(synk): add a K-reduction grid axis (accumulator + pl.when
        # init/finalize) for production-sized layers instead of falling back.
        return _reference(x, w1, w2)

    # Zero-padding is exact: padded hidden columns give tanh(0) = 0 which
    # contributes nothing; padded output columns are sliced off below.
    w1p = jnp.pad(w1, ((0, 0), (0, hid_pad - hid)))
    w2p = jnp.pad(w2, ((0, hid_pad - hid), (0, out_pad - out_sz)))

    tile_b = _choose_tile_b(B, tile_b)
    while tile_b > 8 and _vmem_bytes(tile_b, in_sz, hid_pad, out_pad,
                                     hid_chunk) > _VMEM_TILE_BUDGET:
        tile_b = max(8, ((tile_b // 2) // 8) * 8)

    grid = (pl.cdiv(B, tile_b),)

    kernel = functools.partial(_mlp_kernel, hid_chunk=hid_chunk, n_chunks=n_chunks)

    cost = pl.CostEstimate(
        flops=2 * B * in_sz * hid + 2 * B * hid * out_sz,
        transcendentals=B * hid,
        bytes_accessed=4 * (B * in_sz + in_sz * hid + hid * out_sz + B * out_sz),
    )

    out_padded = pl.pallas_call(
        kernel,
        out_shape=jax.ShapeDtypeStruct((B, out_pad), x.dtype),
        grid_spec=pltpu.PrefetchScalarGridSpec(
            num_scalar_prefetch=0,
            grid=grid,
            in_specs=[
                pl.BlockSpec((tile_b, in_sz), lambda i: (i, 0)),
                pl.BlockSpec((in_sz, hid_pad), lambda i: (0, 0)),
                pl.BlockSpec((hid_pad, out_pad), lambda i: (0, 0)),
            ],
            out_specs=pl.BlockSpec((tile_b, out_pad), lambda i: (i, 0)),
        ),
        compiler_params=pltpu.CompilerParams(
            dimension_semantics=("parallel",),
            vmem_limit_bytes=_VMEM_LIMIT_BYTES,
        ),
        cost_estimate=cost,
    )(x, w1p, w2p)

    return out_padded[:, :out_sz]


def net_forward(x, w1, w2, **kwargs):
    """Size-gated dispatcher: tiny problems go straight to XLA."""
    B = x.shape[0]
    hid = w1.shape[1]
    if B * hid < _MIN_PALLAS_ELEMS:
        return _reference(x, w1, w2)
    return net_forward_pallas(x, w1, w2, **kwargs)


if __name__ == "__main__":
    key = jax.random.PRNGKey(0)

    # --- main test: big enough to take the Pallas path (2 grid steps) -------
    B, in_sz, hid, out_sz = 512, 96, 320, 8
    kx, k1, k2, key = jax.random.split(key, 4)
    x = jax.random.normal(kx, (B, in_sz), dtype=jnp.float32)
    w1 = jax.random.normal(k1, (in_sz, hid), dtype=jnp.float32)
    w2 = jax.random.normal(k2, (hid, out_sz), dtype=jnp.float32)

    out = jax.block_until_ready(net_forward(x, w1, w2))
    ref = _reference(x, w1, w2)
    assert out.shape == (B, out_sz)
    assert jnp.allclose(out, ref, atol=1e-3, rtol=1e-4)

    # --- ragged batch + multi-chunk hidden dim through the Pallas path ------
    B2, in2, hid2, out2 = 200, 16, 256, 3
    kx, k1, k2, key = jax.random.split(key, 4)
    x2 = jax.random.normal(kx, (B2, in2), dtype=jnp.float32)
    w1b = jax.random.normal(k1, (in2, hid2), dtype=jnp.float32)
    w2b = jax.random.normal(k2, (hid2, out2), dtype=jnp.float32)
    out2_v = jax.block_until_ready(net_forward_pallas(x2, w1b, w2b, hid_chunk=128))
    assert out2_v.shape == (B2, out2)
    assert jnp.allclose(out2_v, _reference(x2, w1b, w2b), atol=1e-3, rtol=1e-4)

    # --- tiny toy shape (original module defaults): gated to plain XLA ------
    kx, k1, k2, key = jax.random.split(key, 4)
    x3 = jax.random.normal(kx, (8, 16), dtype=jnp.float32)
    w1c = jax.random.normal(k1, (16, 32), dtype=jnp.float32)
    w2c = jax.random.normal(k2, (32, 8), dtype=jnp.float32)
    out3 = jax.block_until_ready(net_forward(x3, w1c, w2c))
    assert jnp.allclose(out3, _reference(x3, w1c, w2c), atol=1e-5, rtol=1e-5)

    print("KERNEL_OK")
</pallas_src>

<mosaic_0001>
module attributes {stable_mosaic.version = 11 : i64} {
  func.func @_mlp_kernel(%arg0: i32, %arg1: memref<256x96xf32, #tpu.memory_space<vmem>>, %arg2: memref<96x384xf32, #tpu.memory_space<vmem>>, %arg3: memref<384x128xf32, #tpu.memory_space<vmem>>, %arg4: memref<256x128xf32, #tpu.memory_space<vmem>>) attributes {dimension_semantics = [#tpu.dimension_semantics<parallel>], iteration_bounds = array<i64: 2>, scalar_prefetch = 0 : i64, scratch_operands = 0 : i64, tpu.core_type = #tpu.core_type<tc>, window_params = [{transform_indices = @transform_0, window_bounds = array<i64: 256, 96>}, {pipeline_mode = #tpu.pipeline_mode<synchronous>, transform_indices = @transform_1, window_bounds = array<i64: 96, 384>}, {pipeline_mode = #tpu.pipeline_mode<synchronous>, transform_indices = @transform_2, window_bounds = array<i64: 384, 128>}, {transform_indices = @transform_3, window_bounds = array<i64: 256, 128>}]} {
    %c0 = arith.constant 0 : index
    %c0_0 = arith.constant 0 : index
    %0 = vector.load %arg1[%c0, %c0_0] : memref<256x96xf32, #tpu.memory_space<vmem>>, vector<256x96xf32>
    %c0_1 = arith.constant 0 : index
    %c0_2 = arith.constant 0 : index
    %1 = vector.load %arg2[%c0_1, %c0_2] : memref<96x384xf32, #tpu.memory_space<vmem>>, vector<96x384xf32>
    %cst = arith.constant dense<0.000000e+00> : vector<256x384xf32>
    %2 = tpu.matmul %0, %1, %cst {dimension_numbers = #tpu.dot_dimension_numbers<[1], [0], [0], [1], [0, 0, 1, 1], [], []>} : vector<256x96xf32>, vector<96x384xf32>, vector<256x384xf32> -> vector<256x384xf32>
    %3 = math.tanh %2 : vector<256x384xf32>
    %c0_3 = arith.constant 0 : index
    %c0_4 = arith.constant 0 : index
    %4 = vector.load %arg3[%c0_3, %c0_4] : memref<384x128xf32, #tpu.memory_space<vmem>>, vector<384x128xf32>
    %cst_5 = arith.constant dense<0.000000e+00> : vector<256x128xf32>
    %5 = tpu.matmul %3, %4, %cst_5 {dimension_numbers = #tpu.dot_dimension_numbers<[1], [0], [0], [1], [0, 0, 1, 1], [], []>} : vector<256x384xf32>, vector<384x128xf32>, vector<256x128xf32> -> vector<256x128xf32>
    %c0_6 = arith.constant 0 : index
    %c0_7 = arith.constant 0 : index
    %6 = vector.load %arg4[%c0_6, %c0_7] : memref<256x128xf32, #tpu.memory_space<vmem>>, vector<256x128xf32>
    tpu.vector_store %arg4[%c0_6, %c0_7], %5 {strides = array<i32>} : memref<256x128xf32, #tpu.memory_space<vmem>>, vector<256x128xf32>,
    return
  }
  func.func @transform_0(%arg0: i32) -> (i32, i32) {
    %c0_i32 = arith.constant 0 : i32
    %c0_i32_0 = arith.constant 0 : i32
    return %arg0, %c0_i32 : i32, i32
  }
  func.func @transform_1(%arg0: i32) -> (i32, i32) {
    %c0_i32 = arith.constant 0 : i32
    %c0_i32_0 = arith.constant 0 : i32
    %c0_i32_1 = arith.constant 0 : i32
    return %c0_i32, %c0_i32_0 : i32, i32
  }
  func.func @transform_2(%arg0: i32) -> (i32, i32) {
    %c0_i32 = arith.constant 0 : i32
    %c0_i32_0 = arith.constant 0 : i32
    %c0_i32_1 = arith.constant 0 : i32
    return %c0_i32, %c0_i32_0 : i32, i32
  }
  func.func @transform_3(%arg0: i32) -> (i32, i32) {
    %c0_i32 = arith.constant 0 : i32
    %c0_i32_0 = arith.constant 0 : i32
    return %arg0, %c0_i32 : i32, i32
  }
}

</mosaic_0001>

<llo_original>
// kernel: tpu_custom_call.1
$region0: #{tpu_custom_call.1}
  #allocation0 [shape = 'u32[]', space=smem, size = 0x4, offset = 0x4, fixed_abs, tag = 'smem constant byte address 0x4 - core index']
  #allocation1 [shape = 'u32[144,128]{1,0:T(1,128)}', space=vmem, size = 0x12000, scoped, tag = 'internal scratch']
  %s0 = inlined_call_operand.vmem [shape: f32[512,96], index: 0, kind: input, shape index: {}]
  %s1 = inlined_call_operand.vmem [shape: f32[96,384], index: 1, kind: input, shape index: {}]
  %s2 = inlined_call_operand.vmem [shape: f32[384,128], index: 2, kind: input, shape index: {}]
  %s3 = inlined_call_operand.hbm [shape: f32[512,128], index: 3, kind: output, shape index: {}]
  %s4 = sld [smem:[#allocation0]]
  $region45: #{tpu_custom_call.1} parent=0
    _
  %s6 = ssub.s32 1, %s4
  %s7 = scalar_select 0, %s6, %s4
  $region1: #{tpu_custom_call.1} parent=0
    #allocation2 [shape = 'u8[262144]{0}', space=vmem, size = 0x40000, scoped, tag = 'output window, operand 0']
    #allocation3 [shape = 's32[2]{0}', space=sflag, size = 0x8, scoped, tag = 'scoped memory for tpu_custom_call.1']
    %8 = vsyncpa [#allocation3], 0
    %s9 = scalar_lea.sflag [#allocation3], 1
    %10 = vsyncpa %s9, 0
    loop: start=0, step=1, limit=4
    $region2: #{tpu_custom_call.1} parent=1 // loop_pre_header
      _
    $region3: #{tpu_custom_call.1} parent=1 // loop_header
      %s12 = sphi 0, %s16
      %p13 = scmp.ge.s32.totalorder %s12, 4
      %s22 = sphi 0, %s24
      %s25 = sphi 0, %s22
      %s26 = sphi 0, %s25
      %s42 = sphi 0, %s26
      %s46 = sphi 0, %s46
      %s48 = sphi 0, %s46
      %s49 = sphi 0, %s48
      %s63 = sphi 0, %s49
      %s67 = sphi 0, %s67
      %s69 = sphi 0, %s67
      %s70 = sphi 0, %s69
      %s84 = sphi 0, %s70
      %s90 = sphi 0, %s92
      %s93 = sphi 0, %s90
      %s94 = sphi 0, %s93
      %s110 = sphi 0, %s94
    $region4: #{tpu_custom_call.1} parent=1 // loop_header_branch
      %15 = sbr.rel (%p13) target = $region8
    $region5: #{tpu_custom_call.1} parent=1 // loop_body
      %s17 = ssub.s32 %s12, 1
      %s18 = ssub.s32 %s12, 2
      %s19 = sadd.s32 %s12, 1
      %s20 = ssub.s32 %s12, %s19
      %p21 = scmp.eq.s32.totalorder %s20, 0
      %s23 = sadd.s32 %s22, 1
      %s24 = scalar_select %p21, %s22, %s23
      %p27 = pneg %p21
      %p28 = scmp.eq.s32.totalorder %s12, 1
      %p29 = por %p27, %p28
      %p30 = scmp.ne.s32.totalorder %s22, %s25
      %p31 = scmp.eq.s32.totalorder %s12, 0
      %p32 = por %p30, %p31
      %p33 = scmp.ne.s32.totalorder %s22, %s25
      %p34 = scmp.eq.s32.totalorder %s17, 1
      %p35 = por %p33, %p34
      %p36 = scmp.ne.s32.totalorder %s25, %s26
      %p37 = scmp.eq.s32.totalorder %s17, 0
      %p38 = por %p36, %p37
      %p39 = scmp.ne.s32.totalorder %s25, %s26
      %p40 = scmp.eq.s32.totalorder %s18, 1
      %p41 = por %p39, %p40
      %p43 = scmp.ne.s32.totalorder %s26, %s42
      %p44 = scmp.eq.s32.totalorder %s18, 0
      %p45 = por %p43, %p44
      %s47 = sadd.s32 %s46, 1
      %p50 = scmp.eq.s32.totalorder %s12, 1
      %p51 = scmp.ne.s32.totalorder %s46, %s48
      %p52 = scmp.eq.s32.totalorder %s12, 0
      %p53 = por %p51, %p52
      %p54 = scmp.ne.s32.totalorder %s46, %s48
      %p55 = scmp.eq.s32.totalorder %s17, 1
      %p56 = por %p54, %p55
      %p57 = scmp.ne.s32.totalorder %s48, %s49
      %p58 = scmp.eq.s32.totalorder %s17, 0
      %p59 = por %p57, %p58
      %p60 = scmp.ne.s32.totalorder %s48, %s49
      %p61 = scmp.eq.s32.totalorder %s18, 1
      %p62 = por %p60, %p61
      %p64 = scmp.ne.s32.totalorder %s49, %s63
      %p65 = scmp.eq.s32.totalorder %s18, 0
      %p66 = por %p64, %p65
      %s68 = sadd.s32 %s67, 1
      %p71 = scmp.eq.s32.totalorder %s12, 1
      %p72 = scmp.ne.s32.totalorder %s67, %s69
      %p73 = scmp.eq.s32.totalorder %s12, 0
      %p74 = por %p72, %p73
      %p75 = scmp.ne.s32.totalorder %s67, %s69
      %p76 = scmp.eq.s32.totalorder %s17, 1
      %p77 = por %p75, %p76
      %p78 = scmp.ne.s32.totalorder %s69, %s70
      %p79 = scmp.eq.s32.totalorder %s17, 0
      %p80 = por %p78, %p79
      %p81 = scmp.ne.s32.totalorder %s69, %s70
      %p82 = scmp.eq.s32.totalorder %s18, 1
      %p83 = por %p81, %p82
      %p85 = scmp.ne.s32.totalorder %s70, %s84
      %p86 = scmp.eq.s32.totalorder %s18, 0
      %p87 = por %p85, %p86
      %s88 = ssub.s32 %s12, %s19
      %p89 = scmp.eq.s32.totalorder %s88, 0
      %s91 = sadd.s32 %s90, 1
      %s92 = scalar_select %p89, %s90, %s91
      %p95 = pneg %p89
      %p96 = scmp.eq.s32.totalorder %s12, 1
      %p97 = por %p95, %p96
      %p98 = scmp.ne.s32.totalorder %s90, %s93
      %p99 = scmp.eq.s32.totalorder %s12, 0
      %p100 = por %p98, %p99
      %p101 = scmp.ne.s32.totalorder %s90, %s93
      %p102 = scmp.eq.s32.totalorder %s17, 1
      %p103 = por %p101, %p102
      %p104 = scmp.ne.s32.totalorder %s93, %s94
      %p105 = scmp.eq.s32.totalorder %s17, 0
      %p106 = por %p104, %p105
      %p107 = scmp.ne.s32.totalorder %s93, %s94
      %p108 = scmp.eq.s32.totalorder %s18, 1
      %p109 = por %p107, %p108
      %p111 = scmp.ne.s32.totalorder %s94, %s110
      %p112 = scmp.eq.s32.totalorder %s18, 0
      %p113 = por %p111, %p112
      %p114 = scmp.le.s32.totalorder 1, %s12
      %p115 = scmp.lt.s32.totalorder %s12, 3
      %p116 = pnand %p114, %p115
      %p117 = pneg %p116
      // Predicated region
      $region9: #{tpu_custom_call.1} parent=5 // pred_check
        _
      $region10: #{tpu_custom_call.1} parent=5 // pred_check_branch
        %119 = sbr.rel (%p116) target = $region12
      $region11: #{tpu_custom_call.1} parent=5 // pred_region
        %s120 = ssub.s32 %s12, 1
        // Predicated region
        $region13: #{tpu_custom_call.1} parent=11 // pred_check
          %p121 = pneg %p59
        $region14: #{tpu_custom_call.1} parent=11 // pred_check_branch
          %123 = sbr.rel (%p121) target = $region16
        $region15: #{tpu_custom_call.1} parent=11 // pred_region
          _
        $region16: #{tpu_custom_call.1} parent=11 // pred_fallthru
          _
        // Predicated region
        $region17: #{tpu_custom_call.1} parent=11 // pred_check
          %p124 = pneg %p80
        $region18: #{tpu_custom_call.1} parent=11 // pred_check_branch
          %126 = sbr.rel (%p124) target = $region20
        $region19: #{tpu_custom_call.1} parent=11 // pred_region
          _
        $region20: #{tpu_custom_call.1} parent=11 // pred_fallthru
          _
      $region12: #{tpu_custom_call.1} parent=5 // pred_fallthru
        _
      %p127 = scmp.lt.s32.totalorder %s12, 2
      // Predicated region
      $region21: #{tpu_custom_call.1} parent=5 // pred_check
        %p128 = pneg %p127
      $region22: #{tpu_custom_call.1} parent=5 // pred_check_branch
        %130 = sbr.rel (%p128) target = $region24
      $region23: #{tpu_custom_call.1} parent=5 // pred_region
        // Predicated region
        $region25: #{tpu_custom_call.1} parent=23 // pred_check
          %p131 = pneg %p32
        $region26: #{tpu_custom_call.1} parent=23 // pred_check_branch
          %133 = sbr.rel (%p131) target = $region28
        $region27: #{tpu_custom_call.1} parent=23 // pred_region
          %s134 = smul.u32 32, %s12
          %p135 = scmp.lt.s32.totalorder %s134, 63
          %s136 = scalar_select %p135, %s134, 63
          %s137 = smul.addr %s136, 8
          %s138 = scalar_lea.vmem %s0, %s137
          %s139 = smul.u32 32, %s12
        $region28: #{tpu_custom_call.1} parent=23 // pred_fallthru
          _
      $region24: #{tpu_custom_call.1} parent=5 // pred_fallthru
        _
      %p140 = scmp.le.s32.totalorder 1, %s12
      %p141 = scmp.lt.s32.totalorder %s12, 3
      %p142 = pnand %p140, %p141
      %p143 = pneg %p142
      // Predicated region
      $region29: #{tpu_custom_call.1} parent=5 // pred_check
        _
      $region30: #{tpu_custom_call.1} parent=5 // pred_check_branch
        %145 = sbr.rel (%p142) target = $region32
      $region31: #{tpu_custom_call.1} parent=5 // pred_region
        %s146 = ssub.s32 %s12, 1
        %s147 = smul.u32 32, %s17
        %p148 = scmp.lt.s32.totalorder %s147, 63
        %s149 = scalar_select %p148, %s147, 63
        %s150 = smul.addr %s149, 8
        %s151 = scalar_lea.vmem %s0, %s150
        %p152 = pneg %p38
        %p153 = pneg %p35
        %p154 = pneg %p59
        %p155 = pneg %p56
        %p156 = pneg %p80
        %p157 = pneg %p77
        %p158 = pneg %p106
        %p159 = pneg %p103
        %s160 = sand.u32 %s93, 1
        %s161 = scalar_lea.sflag [#allocation3], %s160
        %s162 = sand.u32 %s93, 1
        %s163 = smul.addr %s162, 256
        %s164 = scalar_lea.vmem [#allocation2], %s163
        %s165 = smul.u32 32, %s17
        %p166 = scmp.lt.s32.totalorder %s165, 63
        %s167 = scalar_select %p166, %s165, 63
        %s168 = smul.addr %s167, 8
        %s169 = scalar_lea.vmem %s0, %s168
        %s170 = smul.u32 32, %s17
        %s171 = smul.u32 32, %s17
        %v172 = vld [vmem:[%s169] sm:$0xff]
        %v173 = vld [vmem:[%s169 + $0x8] sm:$0xff]
        %v174 = vld [vmem:[%s169 + $0x10] sm:$0xff]
        %v175 = vld [vmem:[%s169 + $0x18] sm:$0xff]
        %v176 = vld [vmem:[%s169 + $0x20] sm:$0xff]
        %v177 = vld [vmem:[%s169 + $0x28] sm:$0xff]
        %v178 = vld [vmem:[%s169 + $0x30] sm:$0xff]
        %v179 = vld [vmem:[%s169 + $0x38] sm:$0xff]
        %v180 = vld [vmem:[%s169 + $0x40] sm:$0xff]
        %v181 = vld [vmem:[%s169 + $0x48] sm:$0xff]
        %v182 = vld [vmem:[%s169 + $0x50] sm:$0xff]
        %v183 = vld [vmem:[%s169 + $0x58] sm:$0xff]
        %v184 = vld [vmem:[%s169 + $0x60] sm:$0xff]
        %v185 = vld [vmem:[%s169 + $0x68] sm:$0xff]
        %v186 = vld [vmem:[%s169 + $0x70] sm:$0xff]
        %v187 = vld [vmem:[%s169 + $0x78] sm:$0xff]
        %v188 = vld [vmem:[%s169 + $0x80] sm:$0xff]
        %v189 = vld [vmem:[%s169 + $0x88] sm:$0xff]
        %v190 = vld [vmem:[%s169 + $0x90] sm:$0xff]
        %v191 = vld [vmem:[%s169 + $0x98] sm:$0xff]
        %v192 = vld [vmem:[%s169 + $0xa0] sm:$0xff]
        %v193 = vld [vmem:[%s169 + $0xa8] sm:$0xff]
        %v194 = vld [vmem:[%s169 + $0xb0] sm:$0xff]
        %v195 = vld [vmem:[%s169 + $0xb8] sm:$0xff]
        %v196 = vld [vmem:[%s169 + $0xc0] sm:$0xff]
        %v197 = vld [vmem:[%s169 + $0xc8] sm:$0xff]
        %v198 = vld [vmem:[%s169 + $0xd0] sm:$0xff]
        %v199 = vld [vmem:[%s169 + $0xd8] sm:$0xff]
        %v200 = vld [vmem:[%s169 + $0xe0] sm:$0xff]
        %v201 = vld [vmem:[%s169 + $0xe8] sm:$0xff]
        %v202 = vld [vmem:[%s169 + $0xf0] sm:$0xff]
        %v203 = vld [vmem:[%s169 + $0xf8] sm:$0xff]
        %v204 = vld [vmem:[%s1] sm:$0xff]
        %v205 = vld [vmem:[%s1 + $0x8] sm:$0xff]
        %v206 = vld [vmem:[%s1 + $0x10] sm:$0xff]
        %v207 = vld [vmem:[%s1 + $0x18] sm:$0xff]
        %v208 = vld [vmem:[%s1 + $0x20] sm:$0xff]
        %v209 = vld [vmem:[%s1 + $0x28] sm:$0xff]
        %v210 = vld [vmem:[%s1 + $0x30] sm:$0xff]
        %v211 = vld [vmem:[%s1 + $0x38] sm:$0xff]
        %v212 = vld [vmem:[%s1 + $0x40] sm:$0xff]
        %v213 = vld [vmem:[%s1 + $0x48] sm:$0xff]
        %v214 = vld [vmem:[%s1 + $0x50] sm:$0xff]
        %v215 = vld [vmem:[%s1 + $0x58] sm:$0xff]
        %v216 = vld [vmem:[%s1 + $0x60] sm:$0xff]
        %v217 = vld [vmem:[%s1 + $0x68] sm:$0xff]
        %v218 = vld [vmem:[%s1 + $0x70] sm:$0xff]
        %v219 = vld [vmem:[%s1 + $0x78] sm:$0xff]
        %v220 = vld [vmem:[%s1 + $0x80] sm:$0xff]
        %v221 = vld [vmem:[%s1 + $0x88] sm:$0xff]
        %v222 = vld [vmem:[%s1 + $0x90] sm:$0xff]
        %v223 = vld [vmem:[%s1 + $0x98] sm:$0xff]
        %v224 = vld [vmem:[%s1 + $0xa0] sm:$0xff]
        %v225 = vld [vmem:[%s1 + $0xa8] sm:$0xff]
        %v226 = vld [vmem:[%s1 + $0xb0] sm:$0xff]
        %v227 = vld [vmem:[%s1 + $0xb8] sm:$0xff]
        %v228 = vld [vmem:[%s1 + $0xc0] sm:$0xff]
        %v229 = vld [vmem:[%s1 + $0xc8] sm:$0xff]
        %v230 = vld [vmem:[%s1 + $0xd0] sm:$0xff]
        %v231 = vld [vmem:[%s1 + $0xd8] sm:$0xff]
        %v232 = vld [vmem:[%s1 + $0xe0] sm:$0xff]
        %v233 = vld [vmem:[%s1 + $0xe8] sm:$0xff]
        %v234 = vld [vmem:[%s1 + $0xf0] sm:$0xff]
        %v235 = vld [vmem:[%s1 + $0xf8] sm:$0xff]
        %v236 = vld [vmem:[%s1 + $0x100] sm:$0xff]
        %v237 = vld [vmem:[%s1 + $0x108] sm:$0xff]
        %v238 = vld [vmem:[%s1 + $0x110] sm:$0xff]
        %v239 = vld [vmem:[%s1 + $0x118] sm:$0xff]
        %vm240 = vcmask 785408
        %v242 = vsel %vm240, %v172, 0
        %v245 = vsel %vm240, %v173, 0
        %v248 = vsel %vm240, %v174, 0
        %v251 = vsel %vm240, %v175, 0
        %v254 = vsel %vm240, %v176, 0
        %v257 = vsel %vm240, %v177, 0
        %v260 = vsel %vm240, %v178, 0
        %v263 = vsel %vm240, %v179, 0
        %v266 = vsel %vm240, %v180, 0
        %v269 = vsel %vm240, %v181, 0
        %v272 = vsel %vm240, %v182, 0
        %v275 = vsel %vm240, %v183, 0
        %v278 = vsel %vm240, %v184, 0
        %v281 = vsel %vm240, %v185, 0
        %v284 = vsel %vm240, %v186, 0
        %v287 = vsel %vm240, %v187, 0
        %v290 = vsel %vm240, %v188, 0
        %v293 = vsel %vm240, %v189, 0
        %v296 = vsel %vm240, %v190, 0
        %v299 = vsel %vm240, %v191, 0
        %v302 = vsel %vm240, %v192, 0
        %v305 = vsel %vm240, %v193, 0
        %v308 = vsel %vm240, %v194, 0
        %v311 = vsel %vm240, %v195, 0
        %v314 = vsel %vm240, %v196, 0
        %v317 = vsel %vm240, %v197, 0
        %v320 = vsel %vm240, %v198, 0
        %v323 = vsel %vm240, %v199, 0
        %v326 = vsel %vm240, %v200, 0
        %v329 = vsel %vm240, %v201, 0
        %v332 = vsel %vm240, %v202, 0
        %v335 = vsel %vm240, %v203, 0
        %337 = vmatprep.subr.mxu0 0.0
        %338 = vmatpush1.msra.mxu0 0.0
        %339 = vmatprep.subr.mxu0 0.0
        %340 = vmatpush1.msra.mxu0 0.0
        %341 = vmatprep.subr.mxu0 0.0
        %342 = vmatpush1.msra.mxu0 0.0
        %343 = vmatprep.subr.mxu0 0.0
        %344 = vmatpush1.msra.mxu0 0.0
        %345 = vmatprep.subr.mxu0 %v238
        %346 = vmatpush1.msra.mxu0 %v237
        %347 = vmatprep.subr.mxu0 %v235
        %348 = vmatpush1.msra.mxu0 %v234
        %349 = vmatprep.subr.mxu0 %v232
        %350 = vmatpush1.msra.mxu0 %v231
        %351 = vmatprep.subr.mxu0 %v229
        %352 = vmatpush1.msra.mxu0 %v228
        %353 = vmatprep.subr.mxu0 %v226
        %354 = vmatpush1.msra.mxu0 %v225
        %355 = vmatprep.subr.mxu0 %v223
        %356 = vmatpush1.msra.mxu0 %v222
        %357 = vmatprep.subr.mxu0 %v220
        %358 = vmatpush1.msra.mxu0 %v219
        %359 = vmatprep.subr.mxu0 %v217
        %360 = vmatpush1.msra.mxu0 %v216
        %361 = vmatprep.subr.mxu0 %v214
        %362 = vmatpush1.msra.mxu0 %v213
        %363 = vmatprep.subr.mxu0 %v211
        %364 = vmatpush1.msra.mxu0 %v210
        %365 = vmatprep.subr.mxu0 %v208
        %366 = vmatpush1.msra.mxu0 %v207
        %367 = vmatprep.subr.mxu0 %v205
        %368 = vmatpush1.msra.mxu0 %v204
        %369 = vmatprep.subr.mxu0 0.0
        %370 = vmatpush2.msra.mxu0 0.0
        %371 = vmatprep.subr.mxu0 0.0
        %372 = vmatpush2.msra.mxu0 0.0
        %373 = vmatprep.subr.mxu0 0.0
        %374 = vmatpush2.msra.mxu0 0.0
        %375 = vmatprep.subr.mxu0 0.0
        %376 = vmatpush2.msra.mxu0 0.0
        %377 = vmatprep.subr.mxu0 0.0
        %378 = vmatpush2.msra.mxu0 0.0
        %379 = vmatprep.subr.mxu0 0.0
        %380 = vmatpush2.msra.mxu0 0.0
        %381 = vmatprep.subr.mxu0 0.0
        %382 = vmatpush2.msra.mxu0 0.0
        %383 = vmatprep.subr.mxu0 0.0
        %384 = vmatpush2.msra.mxu0 0.0
        %385 = vmatprep.subr.mxu0 0.0
        %386 = vmatpush2.msra.mxu0 0.0
        %387 = vmatprep.subr.mxu0 0.0
        %388 = vmatpush2.msra.mxu0 0.0
        %389 = vmatprep.subr.mxu0 0.0
        %390 = vmatpush2.msra.mxu0 0.0
        %391 = vmatprep.subr.mxu0 0.0
        %392 = vmatpush2.msra.mxu0 0.0
        %393 = vmatprep.subr.mxu0 0.0
        %394 = vmatpush2.msra.mxu0 0.0
        %395 = vmatprep.subr.mxu0 0.0
        %396 = vmatpush2.msra.mxu0 0.0
        %397 = vmatprep.subr.mxu0 0.0
        %398 = vmatpush2.msra.mxu0 0.0
        %399 = vmatprep.subr.mxu0 0.0
        %400 = vmatpush2.msra.mxu0 0.0
        %401 = vmatprep.mubr.f32.mxu0 0.0
        %402 = vmatmul.mubr.f32.gmra.mxu0 %v242
        %v403 = vpop.f32.mrf.mxu0
        %v404 = vadd.f32 0.0, %v403
        %v405 = vpop.f32.mrf.mxu0
        %v406 = vadd.f32 0.0, %v405
        %407 = vmatprep.mubr.f32.mxu0 0.0
        %408 = vmatmul.mubr.f32.gmra.mxu0 %v245
        %v409 = vpop.f32.mrf.mxu0
        %v410 = vadd.f32 0.0, %v409
        %v411 = vpop.f32.mrf.mxu0
        %v412 = vadd.f32 0.0, %v411
        %413 = vmatprep.mubr.f32.mxu0 0.0
        %414 = vmatmul.mubr.f32.gmra.mxu0 %v248
        %v415 = vpop.f32.mrf.mxu0
        %v416 = vadd.f32 0.0, %v415
        %v417 = vpop.f32.mrf.mxu0
        %v418 = vadd.f32 0.0, %v417
        %419 = vmatprep.mubr.f32.mxu0 0.0
        %420 = vmatmul.mubr.f32.gmra.mxu0 %v251
        %v421 = vpop.f32.mrf.mxu0
        %v422 = vadd.f32 0.0, %v421
        %v423 = vpop.f32.mrf.mxu0
        %v424 = vadd.f32 0.0, %v423
        %425 = vmatprep.mubr.f32.mxu0 0.0
        %426 = vmatmul.mubr.f32.gmra.mxu0 %v254
        %v427 = vpop.f32.mrf.mxu0
        %v428 = vadd.f32 0.0, %v427
        %v429 = vpop.f32.mrf.mxu0
        %v430 = vadd.f32 0.0, %v429
        %431 = vmatprep.mubr.f32.mxu0 0.0
        %432 = vmatmul.mubr.f32.gmra.mxu0 %v257
        %v433 = vpop.f32.mrf.mxu0
        %v434 = vadd.f32 0.0, %v433
        %v435 = vpop.f32.mrf.mxu0
        %v436 = vadd.f32 0.0, %v435
        %437 = vmatprep.mubr.f32.mxu0 0.0
        %438 = vmatmul.mubr.f32.gmra.mxu0 %v260
        %v439 = vpop.f32.mrf.mxu0
        %v440 = vadd.f32 0.0, %v439
        %v441 = vpop.f32.mrf.mxu0
        %v442 = vadd.f32 0.0, %v441
        %443 = vmatprep.mubr.f32.mxu0 0.0
        %444 = vmatmul.mubr.f32.gmra.mxu0 %v263
        %v445 = vpop.f32.mrf.mxu0
        %v446 = vadd.f32 0.0, %v445
        %v447 = vpop.f32.mrf.mxu0
        %v448 = vadd.f32 0.0, %v447
        %449 = vmatprep.mubr.f32.mxu0 0.0
        %450 = vmatmul.mubr.f32.gmra.mxu0 %v266
        %v451 = vpop.f32.mrf.mxu0
        %v452 = vadd.f32 0.0, %v451
        %v453 = vpop.f32.mrf.mxu0
        %v454 = vadd.f32 0.0, %v453
        %455 = vmatprep.mubr.f32.mxu0 0.0
        %456 = vmatmul.mubr.f32.gmra.mxu0 %v269
        %v457 = vpop.f32.mrf.mxu0
        %v458 = vadd.f32 0.0, %v457
        %v459 = vpop.f32.mrf.mxu0
        %v460 = vadd.f32 0.0, %v459
        %461 = vmatprep.mubr.f32.mxu0 0.0
        %462 = vmatmul.mubr.f32.gmra.mxu0 %v272
        %v463 = vpop.f32.mrf.mxu0
        %v464 = vadd.f32 0.0, %v463
        %v465 = vpop.f32.mrf.mxu0
        %v466 = vadd.f32 0.0, %v465
        %467 = vmatprep.mubr.f32.mxu0 0.0
        %468 = vmatmul.mubr.f32.gmra.mxu0 %v275
        %v469 = vpop.f32.mrf.mxu0
        %v470 = vadd.f32 0.0, %v469
        %v471 = vpop.f32.mrf.mxu0
        %v472 = vadd.f32 0.0, %v471
        %473 = vmatprep.mubr.f32.mxu0 0.0
        %474 = vmatmul.mubr.f32.gmra.mxu0 %v278
        %v475 = vpop.f32.mrf.mxu0
        %v476 = vadd.f32 0.0, %v475
        %v477 = vpop.f32.mrf.mxu0
        %v478 = vadd.f32 0.0, %v477
        %479 = vmatprep.mubr.f32.mxu0 0.0
        %480 = vmatmul.mubr.f32.gmra.mxu0 %v281
        %v481 = vpop.f32.mrf.mxu0
        %v482 = vadd.f32 0.0, %v481
        %v483 = vpop.f32.mrf.mxu0
        %v484 = vadd.f32 0.0, %v483
        %485 = vmatprep.mubr.f32.mxu0 0.0
        %486 = vmatmul.mubr.f32.gmra.mxu0 %v284
        %v487 = vpop.f32.mrf.mxu0
        %v488 = vadd.f32 0.0, %v487
        %v489 = vpop.f32.mrf.mxu0
        %v490 = vadd.f32 0.0, %v489
        %491 = vmatprep.mubr.f32.mxu0 0.0
        %492 = vmatmul.mubr.f32.gmra.mxu0 %v287
        %v493 = vpop.f32.mrf.mxu0
        %v494 = vadd.f32 0.0, %v493
        %v495 = vpop.f32.mrf.mxu0
        %v496 = vadd.f32 0.0, %v495
        %497 = vmatprep.mubr.f32.mxu0 0.0
        %498 = vmatmul.mubr.f32.gmra.mxu0 %v290
        %v499 = vpop.f32.mrf.mxu0
        %v500 = vadd.f32 0.0, %v499
        %v501 = vpop.f32.mrf.mxu0
        %v502 = vadd.f32 0.0, %v501
        %503 = vmatprep.mubr.f32.mxu0 0.0
        %504 = vmatmul.mubr.f32.gmra.mxu0 %v293
        %v505 = vpop.f32.mrf.mxu0
        %v506 = vadd.f32 0.0, %v505
        %v507 = vpop.f32.mrf.mxu0
        %v508 = vadd.f32 0.0, %v507
        %509 = vmatprep.mubr.f32.mxu0 0.0
        %510 = vmatmul.mubr.f32.gmra.mxu0 %v296
        %v511 = vpop.f32.mrf.mxu0
        %v512 = vadd.f32 0.0, %v511
        %v513 = vpop.f32.mrf.mxu0
        %v514 = vadd.f32 0.0, %v513
        %515 = vmatprep.mubr.f32.mxu0 0.0
        %516 = vmatmul.mubr.f32.gmra.mxu0 %v299
        %v517 = vpop.f32.mrf.mxu0
        %v518 = vadd.f32 0.0, %v517
        %v519 = vpop.f32.mrf.mxu0
        %v520 = vadd.f32 0.0, %v519
        %521 = vmatprep.mubr.f32.mxu0 0.0
        %522 = vmatmul.mubr.f32.gmra.mxu0 %v302
        %v523 = vpop.f32.mrf.mxu0
        %v524 = vadd.f32 0.0, %v523
        %v525 = vpop.f32.mrf.mxu0
        %v526 = vadd.f32 0.0, %v525
        %527 = vmatprep.mubr.f32.mxu0 0.0
        %528 = vmatmul.mubr.f32.gmra.mxu0 %v305
        %v529 = vpop.f32.mrf.mxu0
        %v530 = vadd.f32 0.0, %v529
        %v531 = vpop.f32.mrf.mxu0
        %v532 = vadd.f32 0.0, %v531
        %533 = vmatprep.mubr.f32.mxu0 0.0
        %534 = vmatmul.mubr.f32.gmra.mxu0 %v308
        %v535 = vpop.f32.mrf.mxu0
        %v536 = vadd.f32 0.0, %v535
        %v537 = vpop.f32.mrf.mxu0
        %v538 = vadd.f32 0.0, %v537
        %539 = vmatprep.mubr.f32.mxu0 0.0
        %540 = vmatmul.mubr.f32.gmra.mxu0 %v311
        %v541 = vpop.f32.mrf.mxu0
        %v542 = vadd.f32 0.0, %v541
        %v543 = vpop.f32.mrf.mxu0
        %v544 = vadd.f32 0.0, %v543
        %545 = vmatprep.mubr.f32.mxu0 0.0
        %546 = vmatmul.mubr.f32.gmra.mxu0 %v314
        %v547 = vpop.f32.mrf.mxu0
        %v548 = vadd.f32 0.0, %v547
        %v549 = vpop.f32.mrf.mxu0
        %v550 = vadd.f32 0.0, %v549
        %551 = vmatprep.mubr.f32.mxu0 0.0
        %552 = vmatmul.mubr.f32.gmra.mxu0 %v317
        %v553 = vpop.f32.mrf.mxu0
        %v554 = vadd.f32 0.0, %v553
        %v555 = vpop.f32.mrf.mxu0
        %v556 = vadd.f32 0.0, %v555
        %557 = vmatprep.mubr.f32.mxu0 0.0
        %558 = vmatmul.mubr.f32.gmra.mxu0 %v320
        %v559 = vpop.f32.mrf.mxu0
        %v560 = vadd.f32 0.0, %v559
        %v561 = vpop.f32.mrf.mxu0
        %v562 = vadd.f32 0.0, %v561
        %563 = vmatprep.mubr.f32.mxu0 0.0
        %564 = vmatmul.mubr.f32.gmra.mxu0 %v323
        %v565 = vpop.f32.mrf.mxu0
        %v566 = vadd.f32 0.0, %v565
        %v567 = vpop.f32.mrf.mxu0
        %v568 = vadd.f32 0.0, %v567
        %569 = vmatprep.mubr.f32.mxu0 0.0
        %570 = vmatmul.mubr.f32.gmra.mxu0 %v326
        %v571 = vpop.f32.mrf.mxu0
        %v572 = vadd.f32 0.0, %v571
        %v573 = vpop.f32.mrf.mxu0
        %v574 = vadd.f32 0.0, %v573
        %575 = vmatprep.mubr.f32.mxu0 0.0
        %576 = vmatmul.mubr.f32.gmra.mxu0 %v329
        %v577 = vpop.f32.mrf.mxu0
        %v578 = vadd.f32 0.0, %v577
        %v579 = vpop.f32.mrf.mxu0
        %v580 = vadd.f32 0.0, %v579
        %581 = vmatprep.mubr.f32.mxu0 0.0
        %582 = vmatmul.mubr.f32.gmra.mxu0 %v332
        %v583 = vpop.f32.mrf.mxu0
        %v584 = vadd.f32 0.0, %v583
        %v585 = vpop.f32.mrf.mxu0
        %v586 = vadd.f32 0.0, %v585
        %587 = vmatprep.mubr.f32.mxu0 0.0
        %588 = vmatmul.mubr.f32.gmra.mxu0 %v335
        %v589 = vpop.f32.mrf.mxu0
        %v590 = vadd.f32 0.0, %v589
        %v591 = vpop.f32.mrf.mxu0
        %v592 = vadd.f32 0.0, %v591
        %593 = vdwg.mxu0
        %594 = vmatprep.subr.mxu0 0.0
        %595 = vmatpush1.msra.mxu0 0.0
        %596 = vmatprep.subr.mxu0 0.0
        %597 = vmatpush1.msra.mxu0 0.0
        %598 = vmatprep.subr.mxu0 0.0
        %599 = vmatpush1.msra.mxu0 0.0
        %600 = vmatprep.subr.mxu0 0.0
        %601 = vmatpush1.msra.mxu0 0.0
        %602 = vmatprep.subr.mxu0 0.0
        %603 = vmatpush1.msra.mxu0 %v239
        %604 = vmatprep.subr.mxu0 0.0
        %605 = vmatpush1.msra.mxu0 %v236
        %606 = vmatprep.subr.mxu0 0.0
        %607 = vmatpush1.msra.mxu0 %v233
        %608 = vmatprep.subr.mxu0 0.0
        %609 = vmatpush1.msra.mxu0 %v230
        %610 = vmatprep.subr.mxu0 0.0
        %611 = vmatpush1.msra.mxu0 %v227
        %612 = vmatprep.subr.mxu0 0.0
        %613 = vmatpush1.msra.mxu0 %v224
        %614 = vmatprep.subr.mxu0 0.0
        %615 = vmatpush1.msra.mxu0 %v221
        %616 = vmatprep.subr.mxu0 0.0
        %617 = vmatpush1.msra.mxu0 %v218
        %618 = vmatprep.subr.mxu0 0.0
        %619 = vmatpush1.msra.mxu0 %v215
        %620 = vmatprep.subr.mxu0 0.0
        %621 = vmatpush1.msra.mxu0 %v212
        %622 = vmatprep.subr.mxu0 0.0
        %623 = vmatpush1.msra.mxu0 %v209
        %624 = vmatprep.subr.mxu0 0.0
        %625 = vmatpush1.msra.mxu0 %v206
        %626 = vmatprep.subr.mxu0 0.0
        %627 = vmatpush2.msra.mxu0 0.0
        %628 = vmatprep.subr.mxu0 0.0
        %629 = vmatpush2.msra.mxu0 0.0
        %630 = vmatprep.subr.mxu0 0.0
        %631 = vmatpush2.msra.mxu0 0.0
        %632 = vmatprep.subr.mxu0 0.0
        %633 = vmatpush2.msra.mxu0 0.0
        %634 = vmatprep.subr.mxu0 0.0
        %635 = vmatpush2.msra.mxu0 0.0
        %636 = vmatprep.subr.mxu0 0.0
        %637 = vmatpush2.msra.mxu0 0.0
        %638 = vmatprep.subr.mxu0 0.0
        %639 = vmatpush2.msra.mxu0 0.0
        %640 = vmatprep.subr.mxu0 0.0
        %641 = vmatpush2.msra.mxu0 0.0
        %642 = vmatprep.subr.mxu0 0.0
        %643 = vmatpush2.msra.mxu0 0.0
        %644 = vmatprep.subr.mxu0 0.0
        %645 = vmatpush2.msra.mxu0 0.0
        %646 = vmatprep.subr.mxu0 0.0
        %647 = vmatpush2.msra.mxu0 0.0
        %648 = vmatprep.subr.mxu0 0.0
        %649 = vmatpush2.msra.mxu0 0.0
        %650 = vmatprep.subr.mxu0 0.0
        %651 = vmatpush2.msra.mxu0 0.0
        %652 = vmatprep.subr.mxu0 0.0
        %653 = vmatpush2.msra.mxu0 0.0
        %654 = vmatprep.subr.mxu0 0.0
        %655 = vmatpush2.msra.mxu0 0.0
        %656 = vmatprep.subr.mxu0 0.0
        %657 = vmatpush2.msra.mxu0 0.0
        %658 = vmatprep.mubr.f32.mxu0 0.0
        %659 = vmatmul.mubr.f32.gmra.mxu0 %v242
        %v660 = vpop.f32.mrf.mxu0
        %v661 = vadd.f32 0.0, %v660
        %v662 = vpop.f32.mrf.mxu0
        %663 = vmatprep.mubr.f32.mxu0 0.0
        %664 = vmatmul.mubr.f32.gmra.mxu0 %v245
        %v665 = vpop.f32.mrf.mxu0
        %v666 = vadd.f32 0.0, %v665
        %v667 = vpop.f32.mrf.mxu0
        %668 = vmatprep.mubr.f32.mxu0 0.0
        %669 = vmatmul.mubr.f32.gmra.mxu0 %v248
        %v670 = vpop.f32.mrf.mxu0
        %v671 = vadd.f32 0.0, %v670
        %v672 = vpop.f32.mrf.mxu0
        %673 = vmatprep.mubr.f32.mxu0 0.0
        %674 = vmatmul.mubr.f32.gmra.mxu0 %v251
        %v675 = vpop.f32.mrf.mxu0
        %v676 = vadd.f32 0.0, %v675
        %v677 = vpop.f32.mrf.mxu0
        %678 = vmatprep.mubr.f32.mxu0 0.0
        %679 = vmatmul.mubr.f32.gmra.mxu0 %v254
        %v680 = vpop.f32.mrf.mxu0
        %v681 = vadd.f32 0.0, %v680
        %v682 = vpop.f32.mrf.mxu0
        %683 = vmatprep.mubr.f32.mxu0 0.0
        %684 = vmatmul.mubr.f32.gmra.mxu0 %v257
        %v685 = vpop.f32.mrf.mxu0
        %v686 = vadd.f32 0.0, %v685
        %v687 = vpop.f32.mrf.mxu0
        %688 = vmatprep.mubr.f32.mxu0 0.0
        %689 = vmatmul.mubr.f32.gmra.mxu0 %v260
        %v690 = vpop.f32.mrf.mxu0
        %v691 = vadd.f32 0.0, %v690
        %v692 = vpop.f32.mrf.mxu0
        %693 = vmatprep.mubr.f32.mxu0 0.0
        %694 = vmatmul.mubr.f32.gmra.mxu0 %v263
        %v695 = vpop.f32.mrf.mxu0
        %v696 = vadd.f32 0.0, %v695
        %v697 = vpop.f32.mrf.mxu0
        %698 = vmatprep.mubr.f32.mxu0 0.0
        %699 = vmatmul.mubr.f32.gmra.mxu0 %v266
        %v700 = vpop.f32.mrf.mxu0
        %v701 = vadd.f32 0.0, %v700
        %v702 = vpop.f32.mrf.mxu0
        %703 = vmatprep.mubr.f32.mxu0 0.0
        %704 = vmatmul.mubr.f32.gmra.mxu0 %v269
        %v705 = vpop.f32.mrf.mxu0
        %v706 = vadd.f32 0.0, %v705
        %v707 = vpop.f32.mrf.mxu0
        %708 = vmatprep.mubr.f32.mxu0 0.0
        %709 = vmatmul.mubr.f32.gmra.mxu0 %v272
        %v710 = vpop.f32.mrf.mxu0
        %v711 = vadd.f32 0.0, %v710
        %v712 = vpop.f32.mrf.mxu0
        %713 = vmatprep.mubr.f32.mxu0 0.0
        %714 = vmatmul.mubr.f32.gmra.mxu0 %v275
        %v715 = vpop.f32.mrf.mxu0
        %v716 = vadd.f32 0.0, %v715
        %v717 = vpop.f32.mrf.mxu0
        %718 = vmatprep.mubr.f32.mxu0 0.0
        %719 = vmatmul.mubr.f32.gmra.mxu0 %v278
        %v720 = vpop.f32.mrf.mxu0
        %v721 = vadd.f32 0.0, %v720
        %v722 = vpop.f32.mrf.mxu0
        %723 = vmatprep.mubr.f32.mxu0 0.0
        %724 = vmatmul.mubr.f32.gmra.mxu0 %v281
        %v725 = vpop.f32.mrf.mxu0
        %v726 = vadd.f32 0.0, %v725
        %v727 = vpop.f32.mrf.mxu0
        %728 = vmatprep.mubr.f32.mxu0 0.0
        %729 = vmatmul.mubr.f32.gmra.mxu0 %v284
        %v730 = vpop.f32.mrf.mxu0
        %v731 = vadd.f32 0.0, %v730
        %v732 = vpop.f32.mrf.mxu0
        %733 = vmatprep.mubr.f32.mxu0 0.0
        %734 = vmatmul.mubr.f32.gmra.mxu0 %v287
        %v735 = vpop.f32.mrf.mxu0
        %v736 = vadd.f32 0.0, %v735
        %v737 = vpop.f32.mrf.mxu0
        %738 = vmatprep.mubr.f32.mxu0 0.0
        %739 = vmatmul.mubr.f32.gmra.mxu0 %v290
        %v740 = vpop.f32.mrf.mxu0
        %v741 = vadd.f32 0.0, %v740
        %v742 = vpop.f32.mrf.mxu0
        %743 = vmatprep.mubr.f32.mxu0 0.0
        %744 = vmatmul.mubr.f32.gmra.mxu0 %v293
        %v745 = vpop.f32.mrf.mxu0
        %v746 = vadd.f32 0.0, %v745
        %v747 = vpop.f32.mrf.mxu0
        %748 = vmatprep.mubr.f32.mxu0 0.0
        %749 = vmatmul.mubr.f32.gmra.mxu0 %v296
        %v750 = vpop.f32.mrf.mxu0
        %v751 = vadd.f32 0.0, %v750
        %v752 = vpop.f32.mrf.mxu0
        %753 = vmatprep.mubr.f32.mxu0 0.0
        %754 = vmatmul.mubr.f32.gmra.mxu0 %v299
        %v755 = vpop.f32.mrf.mxu0
        %v756 = vadd.f32 0.0, %v755
        %v757 = vpop.f32.mrf.mxu0
        %758 = vmatprep.mubr.f32.mxu0 0.0
        %759 = vmatmul.mubr.f32.gmra.mxu0 %v302
        %v760 = vpop.f32.mrf.mxu0
        %v761 = vadd.f32 0.0, %v760
        %v762 = vpop.f32.mrf.mxu0
        %763 = vmatprep.mubr.f32.mxu0 0.0
        %764 = vmatmul.mubr.f32.gmra.mxu0 %v305
        %v765 = vpop.f32.mrf.mxu0
        %v766 = vadd.f32 0.0, %v765
        %v767 = vpop.f32.mrf.mxu0
        %768 = vmatprep.mubr.f32.mxu0 0.0
        %769 = vmatmul.mubr.f32.gmra.mxu0 %v308
        %v770 = vpop.f32.mrf.mxu0
        %v771 = vadd.f32 0.0, %v770
        %v772 = vpop.f32.mrf.mxu0
        %773 = vmatprep.mubr.f32.mxu0 0.0
        %774 = vmatmul.mubr.f32.gmra.mxu0 %v311
        %v775 = vpop.f32.mrf.mxu0
        %v776 = vadd.f32 0.0, %v775
        %v777 = vpop.f32.mrf.mxu0
        %778 = vmatprep.mubr.f32.mxu0 0.0
        %779 = vmatmul.mubr.f32.gmra.mxu0 %v314
        %v780 = vpop.f32.mrf.mxu0
        %v781 = vadd.f32 0.0, %v780
        %v782 = vpop.f32.mrf.mxu0
        %783 = vmatprep.mubr.f32.mxu0 0.0
        %784 = vmatmul.mubr.f32.gmra.mxu0 %v317
        %v785 = vpop.f32.mrf.mxu0
        %v786 = vadd.f32 0.0, %v785
        %v787 = vpop.f32.mrf.mxu0
        %788 = vmatprep.mubr.f32.mxu0 0.0
        %789 = vmatmul.mubr.f32.gmra.mxu0 %v320
        %v790 = vpop.f32.mrf.mxu0
        %v791 = vadd.f32 0.0, %v790
        %v792 = vpop.f32.mrf.mxu0
        %793 = vmatprep.mubr.f32.mxu0 0.0
        %794 = vmatmul.mubr.f32.gmra.mxu0 %v323
        %v795 = vpop.f32.mrf.mxu0
        %v796 = vadd.f32 0.0, %v795
        %v797 = vpop.f32.mrf.mxu0
        %798 = vmatprep.mubr.f32.mxu0 0.0
        %799 = vmatmul.mubr.f32.gmra.mxu0 %v326
        %v800 = vpop.f32.mrf.mxu0
        %v801 = vadd.f32 0.0, %v800
        %v802 = vpop.f32.mrf.mxu0
        %803 = vmatprep.mubr.f32.mxu0 0.0
        %804 = vmatmul.mubr.f32.gmra.mxu0 %v329
        %v805 = vpop.f32.mrf.mxu0
        %v806 = vadd.f32 0.0, %v805
        %v807 = vpop.f32.mrf.mxu0
        %808 = vmatprep.mubr.f32.mxu0 0.0
        %809 = vmatmul.mubr.f32.gmra.mxu0 %v332
        %v810 = vpop.f32.mrf.mxu0
        %v811 = vadd.f32 0.0, %v810
        %v812 = vpop.f32.mrf.mxu0
        %813 = vmatprep.mubr.f32.mxu0 0.0
        %814 = vmatmul.mubr.f32.gmra.mxu0 %v335
        %v815 = vpop.f32.mrf.mxu0
        %v816 = vadd.f32 0.0, %v815
        %v817 = vpop.f32.mrf.mxu0
        %818 = vdwg.mxu0
        %v819 = vtanh.pop %v404
        %v820 = vtanh.pop %v406
        %v821 = vtanh.pop %v661
        %v822 = vtanh.pop %v410
        %v823 = vtanh.pop %v412
        %v824 = vtanh.pop %v666
        %v825 = vtanh.pop %v416
        %v826 = vtanh.pop %v418
        %v827 = vtanh.pop %v671
        %v828 = vtanh.pop %v422
        %v829 = vtanh.pop %v424
        %v830 = vtanh.pop %v676
        %v831 = vtanh.pop %v428
        %v832 = vtanh.pop %v430
        %v833 = vtanh.pop %v681
        %v834 = vtanh.pop %v434
        %v835 = vtanh.pop %v436
        %v836 = vtanh.pop %v686
        %v837 = vtanh.pop %v440
        %v838 = vtanh.pop %v442
        %v839 = vtanh.pop %v691
        %v840 = vtanh.pop %v446
        %v841 = vtanh.pop %v448
        %v842 = vtanh.pop %v696
        %v843 = vtanh.pop %v452
        %v844 = vtanh.pop %v454
        %v845 = vtanh.pop %v701
        %v846 = vtanh.pop %v458
        %v847 = vtanh.pop %v460
        %v848 = vtanh.pop %v706
        %v849 = vtanh.pop %v464
        %v850 = vtanh.pop %v466
        %v851 = vtanh.pop %v711
        %v852 = vtanh.pop %v470
        %v853 = vtanh.pop %v472
        %v854 = vtanh.pop %v716
        %v855 = vtanh.pop %v476
        %v856 = vtanh.pop %v478
        %v857 = vtanh.pop %v721
        %v858 = vtanh.pop %v482
        %v859 = vtanh.pop %v484
        %v860 = vtanh.pop %v726
        %v861 = vtanh.pop %v488
        %v862 = vtanh.pop %v490
        %v863 = vtanh.pop %v731
        %v864 = vtanh.pop %v494
        %v865 = vtanh.pop %v496
        %v866 = vtanh.pop %v736
        %v867 = vtanh.pop %v500
        %v868 = vtanh.pop %v502
        %v869 = vtanh.pop %v741
        %v870 = vtanh.pop %v506
        %v871 = vtanh.pop %v508
        %v872 = vtanh.pop %v746
        %v873 = vtanh.pop %v512
        %v874 = vtanh.pop %v514
        %v875 = vtanh.pop %v751
        %v876 = vtanh.pop %v518
        %v877 = vtanh.pop %v520
        %v878 = vtanh.pop %v756
        %v879 = vtanh.pop %v524
        %v880 = vtanh.pop %v526
        %v881 = vtanh.pop %v761
        %v882 = vtanh.pop %v530
        %v883 = vtanh.pop %v532
        %v884 = vtanh.pop %v766
        %v885 = vtanh.pop %v536
        %v886 = vtanh.pop %v538
        %v887 = vtanh.pop %v771
        %v888 = vtanh.pop %v542
        %v889 = vtanh.pop %v544
        %v890 = vtanh.pop %v776
        %v891 = vtanh.pop %v548
        %v892 = vtanh.pop %v550
        %v893 = vtanh.pop %v781
        %v894 = vtanh.pop %v554
        %v895 = vtanh.pop %v556
        %v896 = vtanh.pop %v786
        %v897 = vtanh.pop %v560
        %v898 = vtanh.pop %v562
        %v899 = vtanh.pop %v791
        %v900 = vtanh.pop %v566
        %v901 = vtanh.pop %v568
        %v902 = vtanh.pop %v796
        %v903 = vtanh.pop %v572
        %v904 = vtanh.pop %v574
        %v905 = vtanh.pop %v801
        %v906 = vtanh.pop %v578
        %v907 = vtanh.pop %v580
        %v908 = vtanh.pop %v806
        %v909 = vtanh.pop %v584
        %v910 = vtanh.pop %v586
        %v911 = vtanh.pop %v811
        %v912 = vtanh.pop %v590
        %v913 = vtanh.pop %v592
        %v914 = vtanh.pop %v816
        %v915 = vld [vmem:[%s2] sm:$0xff]
        %v916 = vld [vmem:[%s2 + $0x8] sm:$0xff]
        %v917 = vld [vmem:[%s2 + $0x10] sm:$0xff]
        %v918 = vld [vmem:[%s2 + $0x18] sm:$0xff]
        %v919 = vld [vmem:[%s2 + $0x20] sm:$0xff]
        %v920 = vld [vmem:[%s2 + $0x28] sm:$0xff]
        %v921 = vld [vmem:[%s2 + $0x30] sm:$0xff]
        %v922 = vld [vmem:[%s2 + $0x38] sm:$0xff]
        %v923 = vld [vmem:[%s2 + $0x40] sm:$0xff]
        %v924 = vld [vmem:[%s2 + $0x48] sm:$0xff]
        %v925 = vld [vmem:[%s2 + $0x50] sm:$0xff]
        %v926 = vld [vmem:[%s2 + $0x58] sm:$0xff]
        %v927 = vld [vmem:[%s2 + $0x60] sm:$0xff]
        %v928 = vld [vmem:[%s2 + $0x68] sm:$0xff]
        %v929 = vld [vmem:[%s2 + $0x70] sm:$0xff]
        %v930 = vld [vmem:[%s2 + $0x78] sm:$0xff]
        %v931 = vld [vmem:[%s2 + $0x80] sm:$0xff]
        %v932 = vld [vmem:[%s2 + $0x88] sm:$0xff]
        %v933 = vld [vmem:[%s2 + $0x90] sm:$0xff]
        %v934 = vld [vmem:[%s2 + $0x98] sm:$0xff]
        %v935 = vld [vmem:[%s2 + $0xa0] sm:$0xff]
        %v936 = vld [vmem:[%s2 + $0xa8] sm:$0xff]
        %v937 = vld [vmem:[%s2 + $0xb0] sm:$0xff]
        %v938 = vld [vmem:[%s2 + $0xb8] sm:$0xff]
        %v939 = vld [vmem:[%s2 + $0xc0] sm:$0xff]
        %v940 = vld [vmem:[%s2 + $0xc8] sm:$0xff]
        %v941 = vld [vmem:[%s2 + $0xd0] sm:$0xff]
        %v942 = vld [vmem:[%s2 + $0xd8] sm:$0xff]
        %v943 = vld [vmem:[%s2 + $0xe0] sm:$0xff]
        %v944 = vld [vmem:[%s2 + $0xe8] sm:$0xff]
        %v945 = vld [vmem:[%s2 + $0xf0] sm:$0xff]
        %v946 = vld [vmem:[%s2 + $0xf8] sm:$0xff]
        %v947 = vld [vmem:[%s2 + $0x100] sm:$0xff]
        %v948 = vld [vmem:[%s2 + $0x108] sm:$0xff]
        %v949 = vld [vmem:[%s2 + $0x110] sm:$0xff]
        %v950 = vld [vmem:[%s2 + $0x118] sm:$0xff]
        %v951 = vld [vmem:[%s2 + $0x120] sm:$0xff]
        %v952 = vld [vmem:[%s2 + $0x128] sm:$0xff]
        %v953 = vld [vmem:[%s2 + $0x130] sm:$0xff]
        %v954 = vld [vmem:[%s2 + $0x138] sm:$0xff]
        %v955 = vld [vmem:[%s2 + $0x140] sm:$0xff]
        %v956 = vld [vmem:[%s2 + $0x148] sm:$0xff]
        %v957 = vld [vmem:[%s2 + $0x150] sm:$0xff]
        %v958 = vld [vmem:[%s2 + $0x158] sm:$0xff]
        %v959 = vld [vmem:[%s2 + $0x160] sm:$0xff]
        %v960 = vld [vmem:[%s2 + $0x168] sm:$0xff]
        %v961 = vld [vmem:[%s2 + $0x170] sm:$0xff]
        %v962 = vld [vmem:[%s2 + $0x178] sm:$0xff]
        %963 = vmatprep.subr.mxu0 0.0
        %964 = vmatpush1.msra.mxu0 %v930
        %965 = vmatprep.subr.mxu0 0.0
        %966 = vmatpush1.msra.mxu0 %v929
        %967 = vmatprep.subr.mxu0 0.0
        %968 = vmatpush1.msra.mxu0 %v928
        %969 = vmatprep.subr.mxu0 0.0
        %970 = vmatpush1.msra.mxu0 %v927
        %971 = vmatprep.subr.mxu0 0.0
        %972 = vmatpush1.msra.mxu0 %v926
        %973 = vmatprep.subr.mxu0 0.0
        %974 = vmatpush1.msra.mxu0 %v925
        %975 = vmatprep.subr.mxu0 0.0
        %976 = vmatpush1.msra.mxu0 %v924
        %977 = vmatprep.subr.mxu0 0.0
        %978 = vmatpush1.msra.mxu0 %v923
        %979 = vmatprep.subr.mxu0 0.0
        %980 = vmatpush1.msra.mxu0 %v922
        %981 = vmatprep.subr.mxu0 0.0
        %982 = vmatpush1.msra.mxu0 %v921
        %983 = vmatprep.subr.mxu0 0.0
        %984 = vmatpush1.msra.mxu0 %v920
        %985 = vmatprep.subr.mxu0 0.0
        %986 = vmatpush1.msra.mxu0 %v919
        %987 = vmatprep.subr.mxu0 0.0
        %988 = vmatpush1.msra.mxu0 %v918
        %989 = vmatprep.subr.mxu0 0.0
        %990 = vmatpush1.msra.mxu0 %v917
        %991 = vmatprep.subr.mxu0 0.0
        %992 = vmatpush1.msra.mxu0 %v916
        %993 = vmatprep.subr.mxu0 0.0
        %994 = vmatpush1.msra.mxu0 %v915
        %995 = vmatprep.subr.mxu0 0.0
        %996 = vmatpush2.msra.mxu0 %v946
        %997 = vmatprep.subr.mxu0 0.0
        %998 = vmatpush2.msra.mxu0 %v945
        %999 = vmatprep.subr.mxu0 0.0
        %1000 = vmatpush2.msra.mxu0 %v944
        %1001 = vmatprep.subr.mxu0 0.0
        %1002 = vmatpush2.msra.mxu0 %v943
        %1003 = vmatprep.subr.mxu0 0.0
        %1004 = vmatpush2.msra.mxu0 %v942
        %1005 = vmatprep.subr.mxu0 0.0
        %1006 = vmatpush2.msra.mxu0 %v941
        %1007 = vmatprep.subr.mxu0 0.0
        %1008 = vmatpush2.msra.mxu0 %v940
        %1009 = vmatprep.subr.mxu0 0.0
        %1010 = vmatpush2.msra.mxu0 %v939
        %1011 = vmatprep.subr.mxu0 0.0
        %1012 = vmatpush2.msra.mxu0 %v938
        %1013 = vmatprep.subr.mxu0 0.0
        %1014 = vmatpush2.msra.mxu0 %v937
        %1015 = vmatprep.subr.mxu0 0.0
        %1016 = vmatpush2.msra.mxu0 %v936
        %1017 = vmatprep.subr.mxu0 0.0
        %1018 = vmatpush2.msra.mxu0 %v935
        %1019 = vmatprep.subr.mxu0 0.0
        %1020 = vmatpush2.msra.mxu0 %v934
        %1021 = vmatprep.subr.mxu0 0.0
        %1022 = vmatpush2.msra.mxu0 %v933
        %1023 = vmatprep.subr.mxu0 0.0
        %1024 = vmatpush2.msra.mxu0 %v932
        %1025 = vmatprep.subr.mxu0 0.0
        %1026 = vmatpush2.msra.mxu0 %v931
        %1027 = vmatprep.mubr.f32.mxu0 %v820
        %1028 = vmatmul.mubr.f32.gmra.mxu0 %v819
        %v1029 = vpop.f32.mrf.mxu0
        %v1030 = vadd.f32 0.0, %v1029
        %v1031 = vpop.f32.mrf.mxu0
        %1032 = vmatprep.mubr.f32.mxu0 %v823
        %1033 = vmatmul.mubr.f32.gmra.mxu0 %v822
        %v1034 = vpop.f32.mrf.mxu0
        %v1035 = vadd.f32 0.0, %v1034
        %v1036 = vpop.f32.mrf.mxu0
        %1037 = vmatprep.mubr.f32.mxu0 %v826
        %1038 = vmatmul.mubr.f32.gmra.mxu0 %v825
        %v1039 = vpop.f32.mrf.mxu0
        %v1040 = vadd.f32 0.0, %v1039
        %v1041 = vpop.f32.mrf.mxu0
        %1042 = vmatprep.mubr.f32.mxu0 %v829
        %1043 = vmatmul.mubr.f32.gmra.mxu0 %v828
        %v1044 = vpop.f32.mrf.mxu0
        %v1045 = vadd.f32 0.0, %v1044
        %v1046 = vpop.f32.mrf.mxu0
        %1047 = vmatprep.mubr.f32.mxu0 %v832
        %1048 = vmatmul.mubr.f32.gmra.mxu0 %v831
        %v1049 = vpop.f32.mrf.mxu0
        %v1050 = vadd.f32 0.0, %v1049
        %v1051 = vpop.f32.mrf.mxu0
        %1052 = vmatprep.mubr.f32.mxu0 %v835
        %1053 = vmatmul.mubr.f32.gmra.mxu0 %v834
        %v1054 = vpop.f32.mrf.mxu0
        %v1055 = vadd.f32 0.0, %v1054
        %v1056 = vpop.f32.mrf.mxu0
        %1057 = vmatprep.mubr.f32.mxu0 %v838
        %1058 = vmatmul.mubr.f32.gmra.mxu0 %v837
        %v1059 = vpop.f32.mrf.mxu0
        %v1060 = vadd.f32 0.0, %v1059
        %v1061 = vpop.f32.mrf.mxu0
        %1062 = vmatprep.mubr.f32.mxu0 %v841
        %1063 = vmatmul.mubr.f32.gmra.mxu0 %v840
        %v1064 = vpop.f32.mrf.mxu0
        %v1065 = vadd.f32 0.0, %v1064
        %v1066 = vpop.f32.mrf.mxu0
        %1067 = vmatprep.mubr.f32.mxu0 %v844
        %1068 = vmatmul.mubr.f32.gmra.mxu0 %v843
        %v1069 = vpop.f32.mrf.mxu0
        %v1070 = vadd.f32 0.0, %v1069
        %v1071 = vpop.f32.mrf.mxu0
        %1072 = vmatprep.mubr.f32.mxu0 %v847
        %1073 = vmatmul.mubr.f32.gmra.mxu0 %v846
        %v1074 = vpop.f32.mrf.mxu0
        %v1075 = vadd.f32 0.0, %v1074
        %v1076 = vpop.f32.mrf.mxu0
        %1077 = vmatprep.mubr.f32.mxu0 %v850
        %1078 = vmatmul.mubr.f32.gmra.mxu0 %v849
        %v1079 = vpop.f32.mrf.mxu0
        %v1080 = vadd.f32 0.0, %v1079
        %v1081 = vpop.f32.mrf.mxu0
        %1082 = vmatprep.mubr.f32.mxu0 %v853
        %1083 = vmatmul.mubr.f32.gmra.mxu0 %v852
        %v1084 = vpop.f32.mrf.mxu0
        %v1085 = vadd.f32 0.0, %v1084
        %v1086 = vpop.f32.mrf.mxu0
        %1087 = vmatprep.mubr.f32.mxu0 %v856
        %1088 = vmatmul.mubr.f32.gmra.mxu0 %v855
        %v1089 = vpop.f32.mrf.mxu0
        %v1090 = vadd.f32 0.0, %v1089
        %v1091 = vpop.f32.mrf.mxu0
        %1092 = vmatprep.mubr.f32.mxu0 %v859
        %1093 = vmatmul.mubr.f32.gmra.mxu0 %v858
        %v1094 = vpop.f32.mrf.mxu0
        %v1095 = vadd.f32 0.0, %v1094
        %v1096 = vpop.f32.mrf.mxu0
        %1097 = vmatprep.mubr.f32.mxu0 %v862
        %1098 = vmatmul.mubr.f32.gmra.mxu0 %v861
        %v1099 = vpop.f32.mrf.mxu0
        %v1100 = vadd.f32 0.0, %v1099
        %v1101 = vpop.f32.mrf.mxu0
        %1102 = vmatprep.mubr.f32.mxu0 %v865
        %1103 = vmatmul.mubr.f32.gmra.mxu0 %v864
        %v1104 = vpop.f32.mrf.mxu0
        %v1105 = vadd.f32 0.0, %v1104
        %v1106 = vpop.f32.mrf.mxu0
        %1107 = vmatprep.mubr.f32.mxu0 %v868
        %1108 = vmatmul.mubr.f32.gmra.mxu0 %v867
        %v1109 = vpop.f32.mrf.mxu0
        %v1110 = vadd.f32 0.0, %v1109
        %v1111 = vpop.f32.mrf.mxu0
        %1112 = vmatprep.mubr.f32.mxu0 %v871
        %1113 = vmatmul.mubr.f32.gmra.mxu0 %v870
        %v1114 = vpop.f32.mrf.mxu0
        %v1115 = vadd.f32 0.0, %v1114
        %v1116 = vpop.f32.mrf.mxu0
        %1117 = vmatprep.mubr.f32.mxu0 %v874
        %1118 = vmatmul.mubr.f32.gmra.mxu0 %v873
        %v1119 = vpop.f32.mrf.mxu0
        %v1120 = vadd.f32 0.0, %v1119
        %v1121 = vpop.f32.mrf.mxu0
        %1122 = vmatprep.mubr.f32.mxu0 %v877
        %1123 = vmatmul.mubr.f32.gmra.mxu0 %v876
        %v1124 = vpop.f32.mrf.mxu0
        %v1125 = vadd.f32 0.0, %v1124
        %v1126 = vpop.f32.mrf.mxu0
        %1127 = vmatprep.mubr.f32.mxu0 %v880
        %1128 = vmatmul.mubr.f32.gmra.mxu0 %v879
        %v1129 = vpop.f32.mrf.mxu0
        %v1130 = vadd.f32 0.0, %v1129
        %v1131 = vpop.f32.mrf.mxu0
        %1132 = vmatprep.mubr.f32.mxu0 %v883
        %1133 = vmatmul.mubr.f32.gmra.mxu0 %v882
        %v1134 = vpop.f32.mrf.mxu0
        %v1135 = vadd.f32 0.0, %v1134
        %v1136 = vpop.f32.mrf.mxu0
        %1137 = vmatprep.mubr.f32.mxu0 %v886
        %1138 = vmatmul.mubr.f32.gmra.mxu0 %v885
        %v1139 = vpop.f32.mrf.mxu0
        %v1140 = vadd.f32 0.0, %v1139
        %v1141 = vpop.f32.mrf.mxu0
        %1142 = vmatprep.mubr.f32.mxu0 %v889
        %1143 = vmatmul.mubr.f32.gmra.mxu0 %v888
        %v1144 = vpop.f32.mrf.mxu0
        %v1145 = vadd.f32 0.0, %v1144
        %v1146 = vpop.f32.mrf.mxu0
        %1147 = vmatprep.mubr.f32.mxu0 %v892
        %1148 = vmatmul.mubr.f32.gmra.mxu0 %v891
        %v1149 = vpop.f32.mrf.mxu0
        %v1150 = vadd.f32 0.0, %v1149
        %v1151 = vpop.f32.mrf.mxu0
        %1152 = vmatprep.mubr.f32.mxu0 %v895
        %1153 = vmatmul.mubr.f32.gmra.mxu0 %v894
        %v1154 = vpop.f32.mrf.mxu0
        %v1155 = vadd.f32 0.0, %v1154
        %v1156 = vpop.f32.mrf.mxu0
        %1157 = vmatprep.mubr.f32.mxu0 %v898
        %1158 = vmatmul.mubr.f32.gmra.mxu0 %v897
        %v1159 = vpop.f32.mrf.mxu0
        %v1160 = vadd.f32 0.0, %v1159
        %v1161 = vpop.f32.mrf.mxu0
        %1162 = vmatprep.mubr.f32.mxu0 %v901
        %1163 = vmatmul.mubr.f32.gmra.mxu0 %v900
        %v1164 = vpop.f32.mrf.mxu0
        %v1165 = vadd.f32 0.0, %v1164
        %v1166 = vpop.f32.mrf.mxu0
        %1167 = vmatprep.mubr.f32.mxu0 %v904
        %1168 = vmatmul.mubr.f32.gmra.mxu0 %v903
        %v1169 = vpop.f32.mrf.mxu0
        %v1170 = vadd.f32 0.0, %v1169
        %v1171 = vpop.f32.mrf.mxu0
        %1172 = vmatprep.mubr.f32.mxu0 %v907
        %1173 = vmatmul.mubr.f32.gmra.mxu0 %v906
        %v1174 = vpop.f32.mrf.mxu0
        %v1175 = vadd.f32 0.0, %v1174
        %v1176 = vpop.f32.mrf.mxu0
        %1177 = vmatprep.mubr.f32.mxu0 %v910
        %1178 = vmatmul.mubr.f32.gmra.mxu0 %v909
        %v1179 = vpop.f32.mrf.mxu0
        %v1180 = vadd.f32 0.0, %v1179
        %v1181 = vpop.f32.mrf.mxu0
        %1182 = vmatprep.mubr.f32.mxu0 %v913
        %1183 = vmatmul.mubr.f32.gmra.mxu0 %v912
        %v1184 = vpop.f32.mrf.mxu0
        %v1185 = vadd.f32 0.0, %v1184
        %v1186 = vpop.f32.mrf.mxu0
        %1187 = vdwg.mxu0
        %1188 = vmatprep.subr.mxu0 0.0
        %1189 = vmatpush1.msra.mxu0 %v962
        %1190 = vmatprep.subr.mxu0 0.0
        %1191 = vmatpush1.msra.mxu0 %v961
        %1192 = vmatprep.subr.mxu0 0.0
        %1193 = vmatpush1.msra.mxu0 %v960
        %1194 = vmatprep.subr.mxu0 0.0
        %1195 = vmatpush1.msra.mxu0 %v959
        %1196 = vmatprep.subr.mxu0 0.0
        %1197 = vmatpush1.msra.mxu0 %v958
        %1198 = vmatprep.subr.mxu0 0.0
        %1199 = vmatpush1.msra.mxu0 %v957
        %1200 = vmatprep.subr.mxu0 0.0
        %1201 = vmatpush1.msra.mxu0 %v956
        %1202 = vmatprep.subr.mxu0 0.0
        %1203 = vmatpush1.msra.mxu0 %v955
        %1204 = vmatprep.subr.mxu0 0.0
        %1205 = vmatpush1.msra.mxu0 %v954
        %1206 = vmatprep.subr.mxu0 0.0
        %1207 = vmatpush1.msra.mxu0 %v953
        %1208 = vmatprep.subr.mxu0 0.0
        %1209 = vmatpush1.msra.mxu0 %v952
        %1210 = vmatprep.subr.mxu0 0.0
        %1211 = vmatpush1.msra.mxu0 %v951
        %1212 = vmatprep.subr.mxu0 0.0
        %1213 = vmatpush1.msra.mxu0 %v950
        %1214 = vmatprep.subr.mxu0 0.0
        %1215 = vmatpush1.msra.mxu0 %v949
        %1216 = vmatprep.subr.mxu0 0.0
        %1217 = vmatpush1.msra.mxu0 %v948
        %1218 = vmatprep.subr.mxu0 0.0
        %1219 = vmatpush1.msra.mxu0 %v947
        %1220 = vmatprep.subr.mxu0 0.0
        %1221 = vmatpush2.msra.mxu0 0.0
        %1222 = vmatprep.subr.mxu0 0.0
        %1223 = vmatpush2.msra.mxu0 0.0
        %1224 = vmatprep.subr.mxu0 0.0
        %1225 = vmatpush2.msra.mxu0 0.0
        %1226 = vmatprep.subr.mxu0 0.0
        %1227 = vmatpush2.msra.mxu0 0.0
        %1228 = vmatprep.subr.mxu0 0.0
        %1229 = vmatpush2.msra.mxu0 0.0
        %1230 = vmatprep.subr.mxu0 0.0
        %1231 = vmatpush2.msra.mxu0 0.0
        %1232 = vmatprep.subr.mxu0 0.0
        %1233 = vmatpush2.msra.mxu0 0.0
        %1234 = vmatprep.subr.mxu0 0.0
        %1235 = vmatpush2.msra.mxu0 0.0
        %1236 = vmatprep.subr.mxu0 0.0
        %1237 = vmatpush2.msra.mxu0 0.0
        %1238 = vmatprep.subr.mxu0 0.0
        %1239 = vmatpush2.msra.mxu0 0.0
        %1240 = vmatprep.subr.mxu0 0.0
        %1241 = vmatpush2.msra.mxu0 0.0
        %1242 = vmatprep.subr.mxu0 0.0
        %1243 = vmatpush2.msra.mxu0 0.0
        %1244 = vmatprep.subr.mxu0 0.0
        %1245 = vmatpush2.msra.mxu0 0.0
        %1246 = vmatprep.subr.mxu0 0.0
        %1247 = vmatpush2.msra.mxu0 0.0
        %1248 = vmatprep.subr.mxu0 0.0
        %1249 = vmatpush2.msra.mxu0 0.0
        %1250 = vmatprep.subr.mxu0 0.0
        %1251 = vmatpush2.msra.mxu0 0.0
        %1252 = vmatprep.mubr.f32.mxu0 0.0
        %1253 = vmatmul.mubr.f32.gmra.mxu0 %v821
        %v1254 = vpop.f32.mrf.mxu0
        %v1255 = vadd.f32 %v1030, %v1254
        %v1256 = vpop.f32.mrf.mxu0
        %1257 = vmatprep.mubr.f32.mxu0 0.0
        %1258 = vmatmul.mubr.f32.gmra.mxu0 %v824
        %v1259 = vpop.f32.mrf.mxu0
        %v1260 = vadd.f32 %v1035, %v1259
        %v1261 = vpop.f32.mrf.mxu0
        %1262 = vmatprep.mubr.f32.mxu0 0.0
        %1263 = vmatmul.mubr.f32.gmra.mxu0 %v827
        %v1264 = vpop.f32.mrf.mxu0
        %v1265 = vadd.f32 %v1040, %v1264
        %v1266 = vpop.f32.mrf.mxu0
        %1267 = vmatprep.mubr.f32.mxu0 0.0
        %1268 = vmatmul.mubr.f32.gmra.mxu0 %v830
        %v1269 = vpop.f32.mrf.mxu0
        %v1270 = vadd.f32 %v1045, %v1269
        %v1271 = vpop.f32.mrf.mxu0
        %1272 = vmatprep.mubr.f32.mxu0 0.0
        %1273 = vmatmul.mubr.f32.gmra.mxu0 %v833
        %v1274 = vpop.f32.mrf.mxu0
        %v1275 = vadd.f32 %v1050, %v1274
        %v1276 = vpop.f32.mrf.mxu0
        %1277 = vmatprep.mubr.f32.mxu0 0.0
        %1278 = vmatmul.mubr.f32.gmra.mxu0 %v836
        %v1279 = vpop.f32.mrf.mxu0
        %v1280 = vadd.f32 %v1055, %v1279
        %v1281 = vpop.f32.mrf.mxu0
        %1282 = vmatprep.mubr.f32.mxu0 0.0
        %1283 = vmatmul.mubr.f32.gmra.mxu0 %v839
        %v1284 = vpop.f32.mrf.mxu0
        %v1285 = vadd.f32 %v1060, %v1284
        %v1286 = vpop.f32.mrf.mxu0
        %1287 = vmatprep.mubr.f32.mxu0 0.0
        %1288 = vmatmul.mubr.f32.gmra.mxu0 %v842
        %v1289 = vpop.f32.mrf.mxu0
        %v1290 = vadd.f32 %v1065, %v1289
        %v1291 = vpop.f32.mrf.mxu0
        %1292 = vmatprep.mubr.f32.mxu0 0.0
        %1293 = vmatmul.mubr.f32.gmra.mxu0 %v845
        %v1294 = vpop.f32.mrf.mxu0
        %v1295 = vadd.f32 %v1070, %v1294
        %v1296 = vpop.f32.mrf.mxu0
        %1297 = vmatprep.mubr.f32.mxu0 0.0
        %1298 = vmatmul.mubr.f32.gmra.mxu0 %v848
        %v1299 = vpop.f32.mrf.mxu0
        %v1300 = vadd.f32 %v1075, %v1299
        %v1301 = vpop.f32.mrf.mxu0
        %1302 = vmatprep.mubr.f32.mxu0 0.0
        %1303 = vmatmul.mubr.f32.gmra.mxu0 %v851
        %v1304 = vpop.f32.mrf.mxu0
        %v1305 = vadd.f32 %v1080, %v1304
        %v1306 = vpop.f32.mrf.mxu0
        %1307 = vmatprep.mubr.f32.mxu0 0.0
        %1308 = vmatmul.mubr.f32.gmra.mxu0 %v854
        %v1309 = vpop.f32.mrf.mxu0
        %v1310 = vadd.f32 %v1085, %v1309
        %v1311 = vpop.f32.mrf.mxu0
        %1312 = vmatprep.mubr.f32.mxu0 0.0
        %1313 = vmatmul.mubr.f32.gmra.mxu0 %v857
        %v1314 = vpop.f32.mrf.mxu0
        %v1315 = vadd.f32 %v1090, %v1314
        %v1316 = vpop.f32.mrf.mxu0
        %1317 = vmatprep.mubr.f32.mxu0 0.0
        %1318 = vmatmul.mubr.f32.gmra.mxu0 %v860
        %v1319 = vpop.f32.mrf.mxu0
        %v1320 = vadd.f32 %v1095, %v1319
        %v1321 = vpop.f32.mrf.mxu0
        %1322 = vmatprep.mubr.f32.mxu0 0.0
        %1323 = vmatmul.mubr.f32.gmra.mxu0 %v863
        %v1324 = vpop.f32.mrf.mxu0
        %v1325 = vadd.f32 %v1100, %v1324
        %v1326 = vpop.f32.mrf.mxu0
        %1327 = vmatprep.mubr.f32.mxu0 0.0
        %1328 = vmatmul.mubr.f32.gmra.mxu0 %v866
        %v1329 = vpop.f32.mrf.mxu0
        %v1330 = vadd.f32 %v1105, %v1329
        %v1331 = vpop.f32.mrf.mxu0
        %1332 = vmatprep.mubr.f32.mxu0 0.0
        %1333 = vmatmul.mubr.f32.gmra.mxu0 %v869
        %v1334 = vpop.f32.mrf.mxu0
        %v1335 = vadd.f32 %v1110, %v1334
        %v1336 = vpop.f32.mrf.mxu0
        %1337 = vmatprep.mubr.f32.mxu0 0.0
        %1338 = vmatmul.mubr.f32.gmra.mxu0 %v872
        %v1339 = vpop.f32.mrf.mxu0
        %v1340 = vadd.f32 %v1115, %v1339
        %v1341 = vpop.f32.mrf.mxu0
        %1342 = vmatprep.mubr.f32.mxu0 0.0
        %1343 = vmatmul.mubr.f32.gmra.mxu0 %v875
        %v1344 = vpop.f32.mrf.mxu0
        %v1345 = vadd.f32 %v1120, %v1344
        %v1346 = vpop.f32.mrf.mxu0
        %1347 = vmatprep.mubr.f32.mxu0 0.0
        %1348 = vmatmul.mubr.f32.gmra.mxu0 %v878
        %v1349 = vpop.f32.mrf.mxu0
        %v1350 = vadd.f32 %v1125, %v1349
        %v1351 = vpop.f32.mrf.mxu0
        %1352 = vmatprep.mubr.f32.mxu0 0.0
        %1353 = vmatmul.mubr.f32.gmra.mxu0 %v881
        %v1354 = vpop.f32.mrf.mxu0
        %v1355 = vadd.f32 %v1130, %v1354
        %v1356 = vpop.f32.mrf.mxu0
        %1357 = vmatprep.mubr.f32.mxu0 0.0
        %1358 = vmatmul.mubr.f32.gmra.mxu0 %v884
        %v1359 = vpop.f32.mrf.mxu0
        %v1360 = vadd.f32 %v1135, %v1359
        %v1361 = vpop.f32.mrf.mxu0
        %1362 = vmatprep.mubr.f32.mxu0 0.0
        %1363 = vmatmul.mubr.f32.gmra.mxu0 %v887
        %v1364 = vpop.f32.mrf.mxu0
        %v1365 = vadd.f32 %v1140, %v1364
        %v1366 = vpop.f32.mrf.mxu0
        %1367 = vmatprep.mubr.f32.mxu0 0.0
        %1368 = vmatmul.mubr.f32.gmra.mxu0 %v890
        %v1369 = vpop.f32.mrf.mxu0
        %v1370 = vadd.f32 %v1145, %v1369
        %v1371 = vpop.f32.mrf.mxu0
        %1372 = vmatprep.mubr.f32.mxu0 0.0
        %1373 = vmatmul.mubr.f32.gmra.mxu0 %v893
        %v1374 = vpop.f32.mrf.mxu0
        %v1375 = vadd.f32 %v1150, %v1374
        %v1376 = vpop.f32.mrf.mxu0
        %1377 = vmatprep.mubr.f32.mxu0 0.0
        %1378 = vmatmul.mubr.f32.gmra.mxu0 %v896
        %v1379 = vpop.f32.mrf.mxu0
        %v1380 = vadd.f32 %v1155, %v1379
        %v1381 = vpop.f32.mrf.mxu0
        %1382 = vmatprep.mubr.f32.mxu0 0.0
        %1383 = vmatmul.mubr.f32.gmra.mxu0 %v899
        %v1384 = vpop.f32.mrf.mxu0
        %v1385 = vadd.f32 %v1160, %v1384
        %v1386 = vpop.f32.mrf.mxu0
        %1387 = vmatprep.mubr.f32.mxu0 0.0
        %1388 = vmatmul.mubr.f32.gmra.mxu0 %v902
        %v1389 = vpop.f32.mrf.mxu0
        %v1390 = vadd.f32 %v1165, %v1389
        %v1391 = vpop.f32.mrf.mxu0
        %1392 = vmatprep.mubr.f32.mxu0 0.0
        %1393 = vmatmul.mubr.f32.gmra.mxu0 %v905
        %v1394 = vpop.f32.mrf.mxu0
        %v1395 = vadd.f32 %v1170, %v1394
        %v1396 = vpop.f32.mrf.mxu0
        %1397 = vmatprep.mubr.f32.mxu0 0.0
        %1398 = vmatmul.mubr.f32.gmra.mxu0 %v908
        %v1399 = vpop.f32.mrf.mxu0
        %v1400 = vadd.f32 %v1175, %v1399
        %v1401 = vpop.f32.mrf.mxu0
        %1402 = vmatprep.mubr.f32.mxu0 0.0
        %1403 = vmatmul.mubr.f32.gmra.mxu0 %v911
        %v1404 = vpop.f32.mrf.mxu0
        %v1405 = vadd.f32 %v1180, %v1404
        %v1406 = vpop.f32.mrf.mxu0
        %1407 = vmatprep.mubr.f32.mxu0 0.0
        %1408 = vmatmul.mubr.f32.gmra.mxu0 %v914
        %v1409 = vpop.f32.mrf.mxu0
        %v1410 = vadd.f32 %v1185, %v1409
        %v1411 = vpop.f32.mrf.mxu0
        %1412 = vdwg.mxu0
        %1413 = vst [vmem:[%s164] sm:$0xff] %v1255
        %1414 = vst [vmem:[%s164 + $0x8] sm:$0xff] %v1260
        %1415 = vst [vmem:[%s164 + $0x10] sm:$0xff] %v1265
        %1416 = vst [vmem:[%s164 + $0x18] sm:$0xff] %v1270
        %1417 = vst [vmem:[%s164 + $0x20] sm:$0xff] %v1275
        %1418 = vst [vmem:[%s164 + $0x28] sm:$0xff] %v1280
        %1419 = vst [vmem:[%s164 + $0x30] sm:$0xff] %v1285
        %1420 = vst [vmem:[%s164 + $0x38] sm:$0xff] %v1290
        %1421 = vst [vmem:[%s164 + $0x40] sm:$0xff] %v1295
        %1422 = vst [vmem:[%s164 + $0x48] sm:$0xff] %v1300
        %1423 = vst [vmem:[%s164 + $0x50] sm:$0xff] %v1305
        %1424 = vst [vmem:[%s164 + $0x58] sm:$0xff] %v1310
        %1425 = vst [vmem:[%s164 + $0x60] sm:$0xff] %v1315
        %1426 = vst [vmem:[%s164 + $0x68] sm:$0xff] %v1320
        %1427 = vst [vmem:[%s164 + $0x70] sm:$0xff] %v1325
        %1428 = vst [vmem:[%s164 + $0x78] sm:$0xff] %v1330
        %1429 = vst [vmem:[%s164 + $0x80] sm:$0xff] %v1335
        %1430 = vst [vmem:[%s164 + $0x88] sm:$0xff] %v1340
        %1431 = vst [vmem:[%s164 + $0x90] sm:$0xff] %v1345
        %1432 = vst [vmem:[%s164 + $0x98] sm:$0xff] %v1350
        %1433 = vst [vmem:[%s164 + $0xa0] sm:$0xff] %v1355
        %1434 = vst [vmem:[%s164 + $0xa8] sm:$0xff] %v1360
        %1435 = vst [vmem:[%s164 + $0xb0] sm:$0xff] %v1365
        %1436 = vst [vmem:[%s164 + $0xb8] sm:$0xff] %v1370
        %1437 = vst [vmem:[%s164 + $0xc0] sm:$0xff] %v1375
        %1438 = vst [vmem:[%s164 + $0xc8] sm:$0xff] %v1380
        %1439 = vst [vmem:[%s164 + $0xd0] sm:$0xff] %v1385
        %1440 = vst [vmem:[%s164 + $0xd8] sm:$0xff] %v1390
        %1441 = vst [vmem:[%s164 + $0xe0] sm:$0xff] %v1395
        %1442 = vst [vmem:[%s164 + $0xe8] sm:$0xff] %v1400
        %1443 = vst [vmem:[%s164 + $0xf0] sm:$0xff] %v1405
        %1444 = vst [vmem:[%s164 + $0xf8] sm:$0xff] %v1410
        %s1445 = sand.u32 %s93, 1
        %s1446 = scalar_lea.sflag [#allocation3], %s1445
        %s1447 = sand.u32 %s93, 1
        %s1448 = smul.addr %s1447, 256
        %s1449 = scalar_lea.vmem [#allocation2], %s1448
        // Predicated region
        $region33: #{tpu_custom_call.1} parent=31 // pred_check
          %p1450 = pneg %p103
        $region34: #{tpu_custom_call.1} parent=31 // pred_check_branch
          %1452 = sbr.rel (%p1450) target = $region36
        $region35: #{tpu_custom_call.1} parent=31 // pred_region
          %s1453 = smul.u32 32, %s17
          %s1455 = ssub.s32 4096, 4096
          %1456 = vsyncadd %s1446, %s1455
          %s1457 = smul.addr %s1453, 128
          %s1458 = scalar_lea.hbm %s3, %s1457
          %s1459 = sshll.u32 %s1449, 4
          %s1460 = int_to_ptr.vmem [resolvable:$true] %s1459
          %1465 = dma.vmem_to_hbm [thread:$0]  %s1460, 4096, %s1458, %s1446, 128, 128, 8
        $region36: #{tpu_custom_call.1} parent=31 // pred_fallthru
          _
      $region32: #{tpu_custom_call.1} parent=5 // pred_fallthru
        _
      %p1466 = scmp.le.s32.totalorder 2, %s12
      // Predicated region
      $region37: #{tpu_custom_call.1} parent=5 // pred_check
        %p1467 = pneg %p1466
      $region38: #{tpu_custom_call.1} parent=5 // pred_check_branch
        %1469 = sbr.rel (%p1467) target = $region40
      $region39: #{tpu_custom_call.1} parent=5 // pred_region
        %s1470 = ssub.s32 %s12, 2
        // Predicated region
        $region41: #{tpu_custom_call.1} parent=39 // pred_check
          %p1471 = pneg %p109
        $region42: #{tpu_custom_call.1} parent=39 // pred_check_branch
          %1473 = sbr.rel (%p1471) target = $region44
        $region43: #{tpu_custom_call.1} parent=39 // pred_region
          %s1474 = sand.u32 %s94, 1
          %s1475 = scalar_lea.sflag [#allocation3], %s1474
          %s1476 = sand.u32 %s94, 1
          %s1477 = smul.addr %s1476, 256
          %s1478 = scalar_lea.vmem [#allocation2], %s1477
          %1479 = dma.done %s1475, 4096
        $region44: #{tpu_custom_call.1} parent=39 // pred_fallthru
          _
      $region40: #{tpu_custom_call.1} parent=5 // pred_fallthru
        _
    $region6: #{tpu_custom_call.1} parent=1 // loop_footer
      %s16 = sadd.s32 1, %s12
    $region7: #{tpu_custom_call.1} parent=1 // loop_footer_branch
      %11 = sbr.rel target = $region3
    $region8: #{tpu_custom_call.1} parent=1 // loop_exit
      _
    %1480 = vsyncpa [#allocation3], 1
    %s1481 = scalar_lea.sflag [#allocation3], 1
    %1482 = vsyncpa %s1481, 1

</llo_original>
